<compile_context>
chip_gen: v6e
topology: v6e:2x2x1
jax: 0.10.0
libtpu: 0.0.40
codegen_flags: <defaults>
</compile_context>

<pallas_src>
import jax
import jax.numpy as jnp
from jax.experimental import pallas as pl
from jax.experimental.pallas import tpu as pltpu

_DROP_P = 0.3
_KEEP_SCALE = 1.0 / (1.0 - _DROP_P)
_DROP_THRESHOLD = int(round(_DROP_P * (1 << 32)))   # bits <  threshold -> dropped
_LEAKY_SLOPE = 0.2                                   # module sets negative_slope=0.2

_VMEM_LIMIT_BYTES = 32 << 20   # within scoped default on v6e/v7x, modest raise on v5e


def _leaky_relu(h):
    return jnp.where(h > 0, h, _LEAKY_SLOPE * h)


def _dropout(h, bits):
    # Inverted dropout: keep with prob 1-p, scale kept values by 1/(1-p).
    # Single unsigned compare + one multiply; not bit-identical to torch's RNG
    # (same distribution).
    keep = bits >= jnp.uint32(_DROP_THRESHOLD)
    return jnp.where(keep, h * jnp.float32(_KEEP_SCALE), jnp.float32(0.0))


def critic_kernel(x_ref, m1_ref, m2_ref, m3_ref,
                  w1_ref, b1_ref, w2_ref, b2_ref,
                  w3_ref, b3_ref, w4_ref, b4_ref,
                  o_ref):
    # Layer 1: bf16 x @ bf16 w1 on the MXU, f32 accumulate, f32 tail.
    h = jnp.dot(x_ref[...], w1_ref[...], preferred_element_type=jnp.float32)
    h = _dropout(_leaky_relu(h + b1_ref[...]), m1_ref[...])

    # Layers 2-3: tiny (<=32-wide) f32 matmuls, lane-sparse MXU filler.
    h = jnp.dot(h, w2_ref[...], preferred_element_type=jnp.float32) + b2_ref[...]
    h = _dropout(_leaky_relu(h), m2_ref[...])

    h = jnp.dot(h, w3_ref[...], preferred_element_type=jnp.float32) + b3_ref[...]
    h = _dropout(_leaky_relu(h), m3_ref[...])

    # Layer 4 + sigmoid.
    z = jnp.dot(h, w4_ref[...], preferred_element_type=jnp.float32) + b4_ref[...]
    o_ref[...] = jax.nn.sigmoid(z).astype(o_ref.dtype)


def init_params(key, input_size, hidden_dim):
    """nn.Linear default init: U(-1/sqrt(fan_in), 1/sqrt(fan_in)).
    Weights stored as (in_features, out_features); biases as (1, out_features)."""
    dims = [input_size, hidden_dim, hidden_dim // 2, hidden_dim // 4, 1]
    params = []
    for i in range(4):
        fan_in, fan_out = dims[i], dims[i + 1]
        key, kw, kb = jax.random.split(key, 3)
        bound = float(1.0 / (fan_in ** 0.5))
        w = jax.random.uniform(kw, (fan_in, fan_out), jnp.float32, -bound, bound)
        b = jax.random.uniform(kb, (1, fan_out), jnp.float32, -bound, bound)
        params.append((w, b))
    return params


def _pick_batch_tile(feat, h1, h2, h3):
    """Largest batch tile (multiple of 8, capped at 1024) such that the
    VMEM-resident weights plus double-buffered per-tile traffic stay well
    inside the conservative cross-generation VMEM budget."""
    w_bytes = feat * h1 * 2 + (h1 * h2 + h2 * h3 + h3) * 4 + (h1 + h2 + h3 + 1) * 4
    budget = max(1 << 20, _VMEM_LIMIT_BYTES // 2 - w_bytes)
    per_row = 2 * (feat * 2 + (h1 + h2 + h3) * 4 + 4)  # 2x buffers: bf16 x + u32 bits + out
    tb = (budget // per_row) // 8 * 8
    return int(max(8, min(1024, tb)))


def vanillagan_critic(x, params, key):
    (w1, b1), (w2, b2), (w3, b3), (w4, b4) = params
    B = x.shape[0]
    xf = x.reshape(B, -1)                      # Flatten (glue, plain JAX)
    feat = xf.shape[1]
    h1, h2, h3 = w1.shape[1], w2.shape[1], w3.shape[1]

    tb = _pick_batch_tile(feat, h1, h2, h3)
    if B <= tb:
        TB, Bp = B, B                          # single tile; block = full batch dim
    else:
        TB = tb
        Bp = pl.cdiv(B, TB) * TB               # pad batch to a multiple of TB

    xf = xf.astype(jnp.bfloat16)               # halve HBM bytes on the dominant input
    if Bp != B:
        xf = jnp.pad(xf, ((0, Bp - B), (0, 0)))
    w1_bf16 = w1.astype(jnp.bfloat16)

    # Per-row dropout bits generated once in the wrapper (tiny vs. x traffic).
    k1, k2, k3 = jax.random.split(key, 3)
    m1 = jax.random.bits(k1, (Bp, h1), dtype=jnp.uint32)
    m2 = jax.random.bits(k2, (Bp, h2), dtype=jnp.uint32)
    m3 = jax.random.bits(k3, (Bp, h3), dtype=jnp.uint32)

    def batch_spec(n):
        return pl.BlockSpec((TB, n), lambda i: (i, 0))

    def const_spec(r, c):
        return pl.BlockSpec((r, c), lambda i: (0, 0))

    w_bytes = (w1_bf16.size * 2
               + (w2.size + w3.size + w4.size) * 4
               + (b1.size + b2.size + b3.size + b4.size) * 4)
    cost = pl.CostEstimate(
        flops=2 * Bp * (feat * h1 + h1 * h2 + h2 * h3 + h3),
        transcendentals=Bp,                                    # sigmoid
        bytes_accessed=Bp * feat * 2 + Bp * (h1 + h2 + h3) * 4 + w_bytes + Bp * 4,
    )

    out = pl.pallas_call(
        critic_kernel,
        out_shape=jax.ShapeDtypeStruct((Bp, 1), jnp.float32),
        grid=(Bp // TB,),
        in_specs=[
            batch_spec(feat),        # x (bf16, double-buffered per tile)
            batch_spec(h1),          # dropout bits, layer 1
            batch_spec(h2),          # dropout bits, layer 2
            batch_spec(h3),          # dropout bits, layer 3
            const_spec(feat, h1),    # w1 (bf16, VMEM-resident)
            const_spec(1, h1),       # b1
            const_spec(h1, h2),      # w2
            const_spec(1, h2),       # b2
            const_spec(h2, h3),      # w3
            const_spec(1, h3),       # b3
            const_spec(h3, 1),       # w4
            const_spec(1, 1),        # b4
        ],
        out_specs=pl.BlockSpec((TB, 1), lambda i: (i, 0)),
        compiler_params=pltpu.CompilerParams(
            dimension_semantics=("parallel",),       # shard batch tiles across TCs (v7x)
            vmem_limit_bytes=_VMEM_LIMIT_BYTES,
        ),
        cost_estimate=cost,
    )(xf, m1, m2, m3, w1_bf16, b1, w2, b2, w3, b3, w4, b4)

    return out[:B]


if __name__ == "__main__":
    key = jax.random.PRNGKey(0)
    k_x, k_p, k_drop = jax.random.split(key, 3)

    # Small shapes consistent with the module: NCHW image input, flattened inside.
    B, C, H, W = 2, 4, 16, 16
    hidden_dim = 32
    input_size = C * H * W

    x = jax.random.normal(k_x, (B, C, H, W), dtype=jnp.float32)
    params = init_params(k_p, input_size, hidden_dim)

    out = vanillagan_critic(x, params, k_drop)
    out = jax.block_until_ready(out)

    assert out.shape == (B, 1)
    assert bool(jnp.all((out >= 0.0) & (out <= 1.0)))
    print("KERNEL_OK")
</pallas_src>

<mosaic_0001>
module attributes {stable_mosaic.version = 11 : i64} {
  func.func @critic_kernel(%arg0: i32, %arg1: memref<2x1024xbf16, #tpu.memory_space<vmem>>, %arg2: memref<2x32xi32, #tpu.memory_space<vmem>>, %arg3: memref<2x16xi32, #tpu.memory_space<vmem>>, %arg4: memref<2x8xi32, #tpu.memory_space<vmem>>, %arg5: memref<1024x32xbf16, #tpu.memory_space<vmem>>, %arg6: memref<1x32xf32, #tpu.memory_space<vmem>>, %arg7: memref<32x16xf32, #tpu.memory_space<vmem>>, %arg8: memref<1x16xf32, #tpu.memory_space<vmem>>, %arg9: memref<16x8xf32, #tpu.memory_space<vmem>>, %arg10: memref<1x8xf32, #tpu.memory_space<vmem>>, %arg11: memref<8x1xf32, #tpu.memory_space<vmem>>, %arg12: memref<1x1xf32, #tpu.memory_space<vmem>>, %arg13: memref<2x1xf32, #tpu.memory_space<vmem>>) attributes {dimension_semantics = [#tpu.dimension_semantics<parallel>], iteration_bounds = array<i64: 1>, scalar_prefetch = 0 : i64, scratch_operands = 0 : i64, tpu.core_type = #tpu.core_type<tc>, window_params = [{transform_indices = @transform_0, window_bounds = array<i64: 2, 1024>}, {transform_indices = @transform_1, window_bounds = array<i64: 2, 32>}, {transform_indices = @transform_2, window_bounds = array<i64: 2, 16>}, {transform_indices = @transform_3, window_bounds = array<i64: 2, 8>}, {pipeline_mode = #tpu.pipeline_mode<synchronous>, transform_indices = @transform_4, window_bounds = array<i64: 1024, 32>}, {pipeline_mode = #tpu.pipeline_mode<synchronous>, transform_indices = @transform_5, window_bounds = array<i64: 1, 32>}, {pipeline_mode = #tpu.pipeline_mode<synchronous>, transform_indices = @transform_6, window_bounds = array<i64: 32, 16>}, {pipeline_mode = #tpu.pipeline_mode<synchronous>, transform_indices = @transform_7, window_bounds = array<i64: 1, 16>}, {pipeline_mode = #tpu.pipeline_mode<synchronous>, transform_indices = @transform_8, window_bounds = array<i64: 16, 8>}, {pipeline_mode = #tpu.pipeline_mode<synchronous>, transform_indices = @transform_9, window_bounds = array<i64: 1, 8>}, {pipeline_mode = #tpu.pipeline_mode<synchronous>, transform_indices = @transform_10, window_bounds = array<i64: 8, 1>}, {pipeline_mode = #tpu.pipeline_mode<synchronous>, transform_indices = @transform_11, window_bounds = array<i64: 1, 1>}, {transform_indices = @transform_12, window_bounds = array<i64: 2, 1>}]} {
    %c0 = arith.constant 0 : index
    %c0_0 = arith.constant 0 : index
    %0 = vector.load %arg1[%c0, %c0_0] : memref<2x1024xbf16, #tpu.memory_space<vmem>>, vector<2x1024xbf16>
    %c0_1 = arith.constant 0 : index
    %c0_2 = arith.constant 0 : index
    %1 = vector.load %arg5[%c0_1, %c0_2] : memref<1024x32xbf16, #tpu.memory_space<vmem>>, vector<1024x32xbf16>
    %cst = arith.constant dense<0.000000e+00> : vector<2x32xf32>
    %2 = tpu.matmul %0, %1, %cst {dimension_numbers = #tpu.dot_dimension_numbers<[1], [0], [0], [1], [0, 0, 1, 1], [], []>} : vector<2x1024xbf16>, vector<1024x32xbf16>, vector<2x32xf32> -> vector<2x32xf32>
    %c0_3 = arith.constant 0 : index
    %c0_4 = arith.constant 0 : index
    %3 = vector.load %arg6[%c0_3, %c0_4] : memref<1x32xf32, #tpu.memory_space<vmem>>, vector<1x32xf32>
    %4 = vector.broadcast %3 : vector<1x32xf32> to vector<2x32xf32>
    %5 = arith.addf %2, %4 : vector<2x32xf32>
    %cst_5 = arith.constant 0.000000e+00 : f32
    %6 = vector.broadcast %cst_5 : f32 to vector<2x32xf32>
    %7 = arith.cmpf ogt, %5, %6 : vector<2x32xf32>
    %cst_6 = arith.constant 2.000000e-01 : f32
    %8 = vector.broadcast %cst_6 : f32 to vector<2x32xf32>
    %9 = arith.mulf %8, %5 : vector<2x32xf32>
    %10 = arith.select %7, %5, %9 : vector<2x32xi1>, vector<2x32xf32>
    %c0_7 = arith.constant 0 : index
    %c0_8 = arith.constant 0 : index
    %11 = vector.load %arg2[%c0_7, %c0_8] : memref<2x32xi32, #tpu.memory_space<vmem>>, vector<2x32xi32>
    %c1288490189_i32 = arith.constant 1288490189 : i32
    %12 = vector.broadcast %c1288490189_i32 : i32 to vector<2x32xi32>
    %13 = arith.cmpi uge, %11, %12 : vector<2x32xi32>
    %cst_9 = arith.constant 1.42857146 : f32
    %14 = vector.broadcast %cst_9 : f32 to vector<2x32xf32>
    %15 = arith.mulf %10, %14 : vector<2x32xf32>
    %cst_10 = arith.constant 0.000000e+00 : f32
    %16 = vector.broadcast %cst_10 : f32 to vector<2x32xf32>
    %17 = arith.select %13, %15, %16 : vector<2x32xi1>, vector<2x32xf32>
    %c0_11 = arith.constant 0 : index
    %c0_12 = arith.constant 0 : index
    %18 = vector.load %arg7[%c0_11, %c0_12] : memref<32x16xf32, #tpu.memory_space<vmem>>, vector<32x16xf32>
    %cst_13 = arith.constant dense<0.000000e+00> : vector<2x16xf32>
    %19 = tpu.matmul %17, %18, %cst_13 {dimension_numbers = #tpu.dot_dimension_numbers<[1], [0], [0], [1], [0, 0, 1, 1], [], []>} : vector<2x32xf32>, vector<32x16xf32>, vector<2x16xf32> -> vector<2x16xf32>
    %c0_14 = arith.constant 0 : index
    %c0_15 = arith.constant 0 : index
    %20 = vector.load %arg8[%c0_14, %c0_15] : memref<1x16xf32, #tpu.memory_space<vmem>>, vector<1x16xf32>
    %21 = vector.broadcast %20 : vector<1x16xf32> to vector<2x16xf32>
    %22 = arith.addf %19, %21 : vector<2x16xf32>
    %cst_16 = arith.constant 0.000000e+00 : f32
    %23 = vector.broadcast %cst_16 : f32 to vector<2x16xf32>
    %24 = arith.cmpf ogt, %22, %23 : vector<2x16xf32>
    %cst_17 = arith.constant 2.000000e-01 : f32
    %25 = vector.broadcast %cst_17 : f32 to vector<2x16xf32>
    %26 = arith.mulf %25, %22 : vector<2x16xf32>
    %27 = arith.select %24, %22, %26 : vector<2x16xi1>, vector<2x16xf32>
    %c0_18 = arith.constant 0 : index
    %c0_19 = arith.constant 0 : index
    %28 = vector.load %arg3[%c0_18, %c0_19] : memref<2x16xi32, #tpu.memory_space<vmem>>, vector<2x16xi32>
    %c1288490189_i32_20 = arith.constant 1288490189 : i32
    %29 = vector.broadcast %c1288490189_i32_20 : i32 to vector<2x16xi32>
    %30 = arith.cmpi uge, %28, %29 : vector<2x16xi32>
    %cst_21 = arith.constant 1.42857146 : f32
    %31 = vector.broadcast %cst_21 : f32 to vector<2x16xf32>
    %32 = arith.mulf %27, %31 : vector<2x16xf32>
    %cst_22 = arith.constant 0.000000e+00 : f32
    %33 = vector.broadcast %cst_22 : f32 to vector<2x16xf32>
    %34 = arith.select %30, %32, %33 : vector<2x16xi1>, vector<2x16xf32>
    %c0_23 = arith.constant 0 : index
    %c0_24 = arith.constant 0 : index
    %35 = vector.load %arg9[%c0_23, %c0_24] : memref<16x8xf32, #tpu.memory_space<vmem>>, vector<16x8xf32>
    %cst_25 = arith.constant dense<0.000000e+00> : vector<2x8xf32>
    %36 = tpu.matmul %34, %35, %cst_25 {dimension_numbers = #tpu.dot_dimension_numbers<[1], [0], [0], [1], [0, 0, 1, 1], [], []>} : vector<2x16xf32>, vector<16x8xf32>, vector<2x8xf32> -> vector<2x8xf32>
    %c0_26 = arith.constant 0 : index
    %c0_27 = arith.constant 0 : index
    %37 = vector.load %arg10[%c0_26, %c0_27] : memref<1x8xf32, #tpu.memory_space<vmem>>, vector<1x8xf32>
    %38 = vector.broadcast %37 : vector<1x8xf32> to vector<2x8xf32>
    %39 = arith.addf %36, %38 : vector<2x8xf32>
    %cst_28 = arith.constant 0.000000e+00 : f32
    %40 = vector.broadcast %cst_28 : f32 to vector<2x8xf32>
    %41 = arith.cmpf ogt, %39, %40 : vector<2x8xf32>
    %cst_29 = arith.constant 2.000000e-01 : f32
    %42 = vector.broadcast %cst_29 : f32 to vector<2x8xf32>
    %43 = arith.mulf %42, %39 : vector<2x8xf32>
    %44 = arith.select %41, %39, %43 : vector<2x8xi1>, vector<2x8xf32>
    %c0_30 = arith.constant 0 : index
    %c0_31 = arith.constant 0 : index
    %45 = vector.load %arg4[%c0_30, %c0_31] : memref<2x8xi32, #tpu.memory_space<vmem>>, vector<2x8xi32>
    %c1288490189_i32_32 = arith.constant 1288490189 : i32
    %46 = vector.broadcast %c1288490189_i32_32 : i32 to vector<2x8xi32>
    %47 = arith.cmpi uge, %45, %46 : vector<2x8xi32>
    %cst_33 = arith.constant 1.42857146 : f32
    %48 = vector.broadcast %cst_33 : f32 to vector<2x8xf32>
    %49 = arith.mulf %44, %48 : vector<2x8xf32>
    %cst_34 = arith.constant 0.000000e+00 : f32
    %50 = vector.broadcast %cst_34 : f32 to vector<2x8xf32>
    %51 = arith.select %47, %49, %50 : vector<2x8xi1>, vector<2x8xf32>
    %c0_35 = arith.constant 0 : index
    %c0_36 = arith.constant 0 : index
    %52 = vector.load %arg11[%c0_35, %c0_36] : memref<8x1xf32, #tpu.memory_space<vmem>>, vector<8x1xf32>
    %cst_37 = arith.constant dense<0.000000e+00> : vector<2x1xf32>
    %53 = tpu.matmul %51, %52, %cst_37 {dimension_numbers = #tpu.dot_dimension_numbers<[1], [0], [0], [1], [0, 0, 1, 1], [], []>} : vector<2x8xf32>, vector<8x1xf32>, vector<2x1xf32> -> vector<2x1xf32>
    %c0_38 = arith.constant 0 : index
    %c0_39 = arith.constant 0 : index
    %54 = vector.load %arg12[%c0_38, %c0_39] : memref<1x1xf32, #tpu.memory_space<vmem>>, vector<1x1xf32>
    %55 = vector.broadcast %54 : vector<1x1xf32> to vector<2x1xf32>
    %56 = arith.addf %53, %55 : vector<2x1xf32>
    %57 = arith.negf %56 : vector<2x1xf32>
    %58 = math.exp %57 : vector<2x1xf32>
    %cst_40 = arith.constant 1.000000e+00 : f32
    %59 = vector.broadcast %cst_40 : f32 to vector<2x1xf32>
    %60 = arith.addf %59, %58 : vector<2x1xf32>
    %61 = arith.divf %59, %60 : vector<2x1xf32>
    %c0_41 = arith.constant 0 : index
    %c0_42 = arith.constant 0 : index
    %62 = vector.load %arg13[%c0_41, %c0_42] : memref<2x1xf32, #tpu.memory_space<vmem>>, vector<2x1xf32>
    tpu.vector_store %arg13[%c0_41, %c0_42], %61 {strides = array<i32>} : memref<2x1xf32, #tpu.memory_space<vmem>>, vector<2x1xf32>,
    return
  }
  func.func @transform_0(%arg0: i32) -> (i32, i32) {
    %c0_i32 = arith.constant 0 : i32
    %c0_i32_0 = arith.constant 0 : i32
    return %arg0, %c0_i32 : i32, i32
  }
  func.func @transform_1(%arg0: i32) -> (i32, i32) {
    %c0_i32 = arith.constant 0 : i32
    %c0_i32_0 = arith.constant 0 : i32
    return %arg0, %c0_i32 : i32, i32
  }
  func.func @transform_2(%arg0: i32) -> (i32, i32) {
    %c0_i32 = arith.constant 0 : i32
    %c0_i32_0 = arith.constant 0 : i32
    return %arg0, %c0_i32 : i32, i32
  }
  func.func @transform_3(%arg0: i32) -> (i32, i32) {
    %c0_i32 = arith.constant 0 : i32
    %c0_i32_0 = arith.constant 0 : i32
    return %arg0, %c0_i32 : i32, i32
  }
  func.func @transform_4(%arg0: i32) -> (i32, i32) {
    %c0_i32 = arith.constant 0 : i32
    %c0_i32_0 = arith.constant 0 : i32
    %c0_i32_1 = arith.constant 0 : i32
    return %c0_i32, %c0_i32_0 : i32, i32
  }
  func.func @transform_5(%arg0: i32) -> (i32, i32) {
    %c0_i32 = arith.constant 0 : i32
    %c0_i32_0 = arith.constant 0 : i32
    %c0_i32_1 = arith.constant 0 : i32
    return %c0_i32, %c0_i32_0 : i32, i32
  }
  func.func @transform_6(%arg0: i32) -> (i32, i32) {
    %c0_i32 = arith.constant 0 : i32
    %c0_i32_0 = arith.constant 0 : i32
    %c0_i32_1 = arith.constant 0 : i32
    return %c0_i32, %c0_i32_0 : i32, i32
  }
  func.func @transform_7(%arg0: i32) -> (i32, i32) {
    %c0_i32 = arith.constant 0 : i32
    %c0_i32_0 = arith.constant 0 : i32
    %c0_i32_1 = arith.constant 0 : i32
    return %c0_i32, %c0_i32_0 : i32, i32
  }
  func.func @transform_8(%arg0: i32) -> (i32, i32) {
    %c0_i32 = arith.constant 0 : i32
    %c0_i32_0 = arith.constant 0 : i32
    %c0_i32_1 = arith.constant 0 : i32
    return %c0_i32, %c0_i32_0 : i32, i32
  }
  func.func @transform_9(%arg0: i32) -> (i32, i32) {
    %c0_i32 = arith.constant 0 : i32
    %c0_i32_0 = arith.constant 0 : i32
    %c0_i32_1 = arith.constant 0 : i32
    return %c0_i32, %c0_i32_0 : i32, i32
  }
  func.func @transform_10(%arg0: i32) -> (i32, i32) {
    %c0_i32 = arith.constant 0 : i32
    %c0_i32_0 = arith.constant 0 : i32
    %c0_i32_1 = arith.constant 0 : i32
    return %c0_i32, %c0_i32_0 : i32, i32
  }
  func.func @transform_11(%arg0: i32) -> (i32, i32) {
    %c0_i32 = arith.constant 0 : i32
    %c0_i32_0 = arith.constant 0 : i32
    %c0_i32_1 = arith.constant 0 : i32
    return %c0_i32, %c0_i32_0 : i32, i32
  }
  func.func @transform_12(%arg0: i32) -> (i32, i32) {
    %c0_i32 = arith.constant 0 : i32
    %c0_i32_0 = arith.constant 0 : i32
    return %arg0, %c0_i32 : i32, i32
  }
}

</mosaic_0001>

<llo_original>
// kernel: tpu_custom_call.1
$region0: #{tpu_custom_call.1}
  #allocation0 [shape = 'u32[]', space=smem, size = 0x4, offset = 0x4, fixed_abs, tag = 'smem constant byte address 0x4 - core index']
  #allocation1 [shape = 'u32[144,128]{1,0:T(1,128)}', space=vmem, size = 0x12000, scoped, tag = 'internal scratch']
  #allocation2 [shape = 'f32[1,1]{1,0:T(1,128)S(1)}', space=vmem, size = 0x200, scoped, tag = 'scoped memory for tpu_custom_call.1']
  %s0 = inlined_call_operand.vmem [shape: bf16[2,1024], index: 0, kind: input, shape index: {}]
  %s1 = inlined_call_operand.vmem [shape: u32[2,32], index: 1, kind: input, shape index: {}]
  %s2 = inlined_call_operand.vmem [shape: u32[2,16], index: 2, kind: input, shape index: {}]
  %s3 = inlined_call_operand.vmem [shape: u32[2,8], index: 3, kind: input, shape index: {}]
  %s4 = inlined_call_operand.vmem [shape: bf16[1024,32], index: 4, kind: input, shape index: {}]
  %s5 = inlined_call_operand.vmem [shape: f32[1,32], index: 5, kind: input, shape index: {}]
  %s6 = inlined_call_operand.vmem [shape: f32[32,16], index: 6, kind: input, shape index: {}]
  %s7 = inlined_call_operand.vmem [shape: f32[1,16], index: 7, kind: input, shape index: {}]
  %s8 = inlined_call_operand.vmem [shape: f32[16,8], index: 8, kind: input, shape index: {}]
  %s9 = inlined_call_operand.vmem [shape: f32[1,8], index: 9, kind: input, shape index: {}]
  %s10 = inlined_call_operand.vmem [shape: f32[8,1], index: 10, kind: input, shape index: {}]
  %s11 = inlined_call_operand.<no memory space> [shape: f32[1,1], index: 11, kind: input, shape index: {}]
  %s12 = inlined_call_operand.vmem [shape: f32[2,1], index: 12, kind: output, shape index: {}]
  %s13 = sld [smem:[#allocation0]]
  $region58: #{tpu_custom_call.1} parent=0
    _
  %s15 = ssub.s32 1, %s13
  %s16 = scalar_select 0, %s15, %s13
  %v17 = vstv %s11
  %18 = vst [vmem:[#allocation2] sm:$0x1] %v17
  // Predicated region
  $region2: #{tpu_custom_call.1} parent=0 // pred_check
    _
  $region3: #{tpu_custom_call.1} parent=0 // pred_check_branch
    %20 = sbr.rel (0) target = $region5
  $region4: #{tpu_custom_call.1} parent=0 // pred_region
    _
  $region5: #{tpu_custom_call.1} parent=0 // pred_fallthru
    _
  // Predicated region
  $region6: #{tpu_custom_call.1} parent=0 // pred_check
    _
  $region7: #{tpu_custom_call.1} parent=0 // pred_check_branch
    %22 = sbr.rel (0) target = $region9
  $region8: #{tpu_custom_call.1} parent=0 // pred_region
    _
  $region9: #{tpu_custom_call.1} parent=0 // pred_fallthru
    _
  // Predicated region
  $region10: #{tpu_custom_call.1} parent=0 // pred_check
    _
  $region11: #{tpu_custom_call.1} parent=0 // pred_check_branch
    %24 = sbr.rel (0) target = $region13
  $region12: #{tpu_custom_call.1} parent=0 // pred_region
    _
  $region13: #{tpu_custom_call.1} parent=0 // pred_fallthru
    _
  // Predicated region
  $region14: #{tpu_custom_call.1} parent=0 // pred_check
    _
  $region15: #{tpu_custom_call.1} parent=0 // pred_check_branch
    %26 = sbr.rel (0) target = $region17
  $region16: #{tpu_custom_call.1} parent=0 // pred_region
    _
  $region17: #{tpu_custom_call.1} parent=0 // pred_fallthru
    _
  // Predicated region
  $region18: #{tpu_custom_call.1} parent=0 // pred_check
    _
  $region19: #{tpu_custom_call.1} parent=0 // pred_check_branch
    %28 = sbr.rel (0) target = $region21
  $region20: #{tpu_custom_call.1} parent=0 // pred_region
    _
  $region21: #{tpu_custom_call.1} parent=0 // pred_fallthru
    _
  // Predicated region
  $region22: #{tpu_custom_call.1} parent=0 // pred_check
    _
  $region23: #{tpu_custom_call.1} parent=0 // pred_check_branch
    %30 = sbr.rel (0) target = $region25
  $region24: #{tpu_custom_call.1} parent=0 // pred_region
    _
  $region25: #{tpu_custom_call.1} parent=0 // pred_fallthru
    _
  // Predicated region
  $region26: #{tpu_custom_call.1} parent=0 // pred_check
    _
  $region27: #{tpu_custom_call.1} parent=0 // pred_check_branch
    %32 = sbr.rel (0) target = $region29
  $region28: #{tpu_custom_call.1} parent=0 // pred_region
    _
  $region29: #{tpu_custom_call.1} parent=0 // pred_fallthru
    _
  // Predicated region
  $region30: #{tpu_custom_call.1} parent=0 // pred_check
    _
  $region31: #{tpu_custom_call.1} parent=0 // pred_check_branch
    %34 = sbr.rel (0) target = $region33
  $region32: #{tpu_custom_call.1} parent=0 // pred_region
    _
  $region33: #{tpu_custom_call.1} parent=0 // pred_fallthru
    _
  // Predicated region
  $region34: #{tpu_custom_call.1} parent=0 // pred_check
    _
  $region35: #{tpu_custom_call.1} parent=0 // pred_check_branch
    %36 = sbr.rel (0) target = $region37
  $region36: #{tpu_custom_call.1} parent=0 // pred_region
    _
  $region37: #{tpu_custom_call.1} parent=0 // pred_fallthru
    _
  // Predicated region
  $region38: #{tpu_custom_call.1} parent=0 // pred_check
    _
  $region39: #{tpu_custom_call.1} parent=0 // pred_check_branch
    %38 = sbr.rel (0) target = $region41
  $region40: #{tpu_custom_call.1} parent=0 // pred_region
    _
  $region41: #{tpu_custom_call.1} parent=0 // pred_fallthru
    _
  // Predicated region
  $region42: #{tpu_custom_call.1} parent=0 // pred_check
    _
  $region43: #{tpu_custom_call.1} parent=0 // pred_check_branch
    %40 = sbr.rel (0) target = $region45
  $region44: #{tpu_custom_call.1} parent=0 // pred_region
    _
  $region45: #{tpu_custom_call.1} parent=0 // pred_fallthru
    _
  // Predicated region
  $region46: #{tpu_custom_call.1} parent=0 // pred_check
    _
  $region47: #{tpu_custom_call.1} parent=0 // pred_check_branch
    %42 = sbr.rel (0) target = $region49
  $region48: #{tpu_custom_call.1} parent=0 // pred_region
    _
  $region49: #{tpu_custom_call.1} parent=0 // pred_fallthru
    _
  %v44 = vld [vmem:[%s0] sm:$0xff]
  %v45 = vld [vmem:[%s4] sm:$0xf]
  %v46 = vld [vmem:[%s4 + $0x4] sm:$0xf]
  %v47 = vld [vmem:[%s4 + $0x8] sm:$0xf]
  %v48 = vld [vmem:[%s4 + $0xc] sm:$0xf]
  %v49 = vld [vmem:[%s4 + $0x10] sm:$0xf]
  %v50 = vld [vmem:[%s4 + $0x14] sm:$0xf]
  %v51 = vld [vmem:[%s4 + $0x18] sm:$0xf]
  %v52 = vld [vmem:[%s4 + $0x1c] sm:$0xf]
  %v53 = vld [vmem:[%s4 + $0x20] sm:$0xf]
  %v54 = vld [vmem:[%s4 + $0x24] sm:$0xf]
  %v55 = vld [vmem:[%s4 + $0x28] sm:$0xf]
  %v56 = vld [vmem:[%s4 + $0x2c] sm:$0xf]
  %v57 = vld [vmem:[%s4 + $0x30] sm:$0xf]
  %v58 = vld [vmem:[%s4 + $0x34] sm:$0xf]
  %v59 = vld [vmem:[%s4 + $0x38] sm:$0xf]
  %v60 = vld [vmem:[%s4 + $0x3c] sm:$0xf]
  %v61 = vld [vmem:[%s4 + $0x40] sm:$0xf]
  %v62 = vld [vmem:[%s4 + $0x44] sm:$0xf]
  %v63 = vld [vmem:[%s4 + $0x48] sm:$0xf]
  %v64 = vld [vmem:[%s4 + $0x4c] sm:$0xf]
  %v65 = vld [vmem:[%s4 + $0x50] sm:$0xf]
  %v66 = vld [vmem:[%s4 + $0x54] sm:$0xf]
  %v67 = vld [vmem:[%s4 + $0x58] sm:$0xf]
  %v68 = vld [vmem:[%s4 + $0x5c] sm:$0xf]
  %v69 = vld [vmem:[%s4 + $0x60] sm:$0xf]
  %v70 = vld [vmem:[%s4 + $0x64] sm:$0xf]
  %v71 = vld [vmem:[%s4 + $0x68] sm:$0xf]
  %v72 = vld [vmem:[%s4 + $0x6c] sm:$0xf]
  %v73 = vld [vmem:[%s4 + $0x70] sm:$0xf]
  %v74 = vld [vmem:[%s4 + $0x74] sm:$0xf]
  %v75 = vld [vmem:[%s4 + $0x78] sm:$0xf]
  %v76 = vld [vmem:[%s4 + $0x7c] sm:$0xf]
  %v77 = vld [vmem:[%s4 + $0x80] sm:$0xf]
  %v78 = vld [vmem:[%s4 + $0x84] sm:$0xf]
  %v79 = vld [vmem:[%s4 + $0x88] sm:$0xf]
  %v80 = vld [vmem:[%s4 + $0x8c] sm:$0xf]
  %v81 = vld [vmem:[%s4 + $0x90] sm:$0xf]
  %v82 = vld [vmem:[%s4 + $0x94] sm:$0xf]
  %v83 = vld [vmem:[%s4 + $0x98] sm:$0xf]
  %v84 = vld [vmem:[%s4 + $0x9c] sm:$0xf]
  %v85 = vld [vmem:[%s4 + $0xa0] sm:$0xf]
  %v86 = vld [vmem:[%s4 + $0xa4] sm:$0xf]
  %v87 = vld [vmem:[%s4 + $0xa8] sm:$0xf]
  %v88 = vld [vmem:[%s4 + $0xac] sm:$0xf]
  %v89 = vld [vmem:[%s4 + $0xb0] sm:$0xf]
  %v90 = vld [vmem:[%s4 + $0xb4] sm:$0xf]
  %v91 = vld [vmem:[%s4 + $0xb8] sm:$0xf]
  %v92 = vld [vmem:[%s4 + $0xbc] sm:$0xf]
  %v93 = vld [vmem:[%s4 + $0xc0] sm:$0xf]
  %v94 = vld [vmem:[%s4 + $0xc4] sm:$0xf]
  %v95 = vld [vmem:[%s4 + $0xc8] sm:$0xf]
  %v96 = vld [vmem:[%s4 + $0xcc] sm:$0xf]
  %v97 = vld [vmem:[%s4 + $0xd0] sm:$0xf]
  %v98 = vld [vmem:[%s4 + $0xd4] sm:$0xf]
  %v99 = vld [vmem:[%s4 + $0xd8] sm:$0xf]
  %v100 = vld [vmem:[%s4 + $0xdc] sm:$0xf]
  %v101 = vld [vmem:[%s4 + $0xe0] sm:$0xf]
  %v102 = vld [vmem:[%s4 + $0xe4] sm:$0xf]
  %v103 = vld [vmem:[%s4 + $0xe8] sm:$0xf]
  %v104 = vld [vmem:[%s4 + $0xec] sm:$0xf]
  %v105 = vld [vmem:[%s4 + $0xf0] sm:$0xf]
  %v106 = vld [vmem:[%s4 + $0xf4] sm:$0xf]
  %v107 = vld [vmem:[%s4 + $0xf8] sm:$0xf]
  %v108 = vld [vmem:[%s4 + $0xfc] sm:$0xf]
  %v109 = vld [vmem:[%s4 + $0x100] sm:$0xf]
  %v110 = vld [vmem:[%s4 + $0x104] sm:$0xf]
  %v111 = vld [vmem:[%s4 + $0x108] sm:$0xf]
  %v112 = vld [vmem:[%s4 + $0x10c] sm:$0xf]
  %v113 = vld [vmem:[%s4 + $0x110] sm:$0xf]
  %v114 = vld [vmem:[%s4 + $0x114] sm:$0xf]
  %v115 = vld [vmem:[%s4 + $0x118] sm:$0xf]
  %v116 = vld [vmem:[%s4 + $0x11c] sm:$0xf]
  %v117 = vld [vmem:[%s4 + $0x120] sm:$0xf]
  %v118 = vld [vmem:[%s4 + $0x124] sm:$0xf]
  %v119 = vld [vmem:[%s4 + $0x128] sm:$0xf]
  %v120 = vld [vmem:[%s4 + $0x12c] sm:$0xf]
  %v121 = vld [vmem:[%s4 + $0x130] sm:$0xf]
  %v122 = vld [vmem:[%s4 + $0x134] sm:$0xf]
  %v123 = vld [vmem:[%s4 + $0x138] sm:$0xf]
  %v124 = vld [vmem:[%s4 + $0x13c] sm:$0xf]
  %v125 = vld [vmem:[%s4 + $0x140] sm:$0xf]
  %v126 = vld [vmem:[%s4 + $0x144] sm:$0xf]
  %v127 = vld [vmem:[%s4 + $0x148] sm:$0xf]
  %v128 = vld [vmem:[%s4 + $0x14c] sm:$0xf]
  %v129 = vld [vmem:[%s4 + $0x150] sm:$0xf]
  %v130 = vld [vmem:[%s4 + $0x154] sm:$0xf]
  %v131 = vld [vmem:[%s4 + $0x158] sm:$0xf]
  %v132 = vld [vmem:[%s4 + $0x15c] sm:$0xf]
  %v133 = vld [vmem:[%s4 + $0x160] sm:$0xf]
  %v134 = vld [vmem:[%s4 + $0x164] sm:$0xf]
  %v135 = vld [vmem:[%s4 + $0x168] sm:$0xf]
  %v136 = vld [vmem:[%s4 + $0x16c] sm:$0xf]
  %v137 = vld [vmem:[%s4 + $0x170] sm:$0xf]
  %v138 = vld [vmem:[%s4 + $0x174] sm:$0xf]
  %v139 = vld [vmem:[%s4 + $0x178] sm:$0xf]
  %v140 = vld [vmem:[%s4 + $0x17c] sm:$0xf]
  %v141 = vld [vmem:[%s4 + $0x180] sm:$0xf]
  %v142 = vld [vmem:[%s4 + $0x184] sm:$0xf]
  %v143 = vld [vmem:[%s4 + $0x188] sm:$0xf]
  %v144 = vld [vmem:[%s4 + $0x18c] sm:$0xf]
  %v145 = vld [vmem:[%s4 + $0x190] sm:$0xf]
  %v146 = vld [vmem:[%s4 + $0x194] sm:$0xf]
  %v147 = vld [vmem:[%s4 + $0x198] sm:$0xf]
  %v148 = vld [vmem:[%s4 + $0x19c] sm:$0xf]
  %v149 = vld [vmem:[%s4 + $0x1a0] sm:$0xf]
  %v150 = vld [vmem:[%s4 + $0x1a4] sm:$0xf]
  %v151 = vld [vmem:[%s4 + $0x1a8] sm:$0xf]
  %v152 = vld [vmem:[%s4 + $0x1ac] sm:$0xf]
  %v153 = vld [vmem:[%s4 + $0x1b0] sm:$0xf]
  %v154 = vld [vmem:[%s4 + $0x1b4] sm:$0xf]
  %v155 = vld [vmem:[%s4 + $0x1b8] sm:$0xf]
  %v156 = vld [vmem:[%s4 + $0x1bc] sm:$0xf]
  %v157 = vld [vmem:[%s4 + $0x1c0] sm:$0xf]
  %v158 = vld [vmem:[%s4 + $0x1c4] sm:$0xf]
  %v159 = vld [vmem:[%s4 + $0x1c8] sm:$0xf]
  %v160 = vld [vmem:[%s4 + $0x1cc] sm:$0xf]
  %v161 = vld [vmem:[%s4 + $0x1d0] sm:$0xf]
  %v162 = vld [vmem:[%s4 + $0x1d4] sm:$0xf]
  %v163 = vld [vmem:[%s4 + $0x1d8] sm:$0xf]
  %v164 = vld [vmem:[%s4 + $0x1dc] sm:$0xf]
  %v165 = vld [vmem:[%s4 + $0x1e0] sm:$0xf]
  %v166 = vld [vmem:[%s4 + $0x1e4] sm:$0xf]
  %v167 = vld [vmem:[%s4 + $0x1e8] sm:$0xf]
  %v168 = vld [vmem:[%s4 + $0x1ec] sm:$0xf]
  %v169 = vld [vmem:[%s4 + $0x1f0] sm:$0xf]
  %v170 = vld [vmem:[%s4 + $0x1f4] sm:$0xf]
  %v171 = vld [vmem:[%s4 + $0x1f8] sm:$0xf]
  %v172 = vld [vmem:[%s4 + $0x1fc] sm:$0xf]
  %v173 = vld [vmem:[%s5] sm:$0x1]
  %v175 = vlaneseq
  %v176 = vshrl.u32 %v175, 7
  %v177 = vsub.s32 0, %v176
  %v178 = vrot.slane %v173, %v177
  %v181 = vcombine.high %v44, %v44
  %v183 = vunpack.c.l.s4 1966171168
  %v184 = vunpack.c.0.s8 %v183
  %v185 = vlaneseq
  %v186 = vshrl.u32 %v185, 7
  %v187 = vsub.s32 %v184, %v186
  %v188 = vrot.slane %v44, %v187
  %v190 = vunpack.c.l.s4 1966171168
  %v191 = vunpack.c.0.s8 %v190
  %v192 = vlaneseq
  %v193 = vshrl.u32 %v192, 7
  %v194 = vsub.s32 %v191, %v193
  %v195 = vrot.slane %v181, %v194
  %v196 = vcombine.high %v188, %v188
  %v197 = vcombine.high %v195, %v195
  %v199 = vunpack.c.l.s4 1966171168
  %v200 = vunpack.c.0.s8 %v199
  %v201 = vlaneseq
  %v202 = vshrl.u32 %v201, 7
  %v203 = vsub.s32 %v200, %v202
  %v204 = vrot.slane %v188, %v203
  %v206 = vunpack.c.l.s4 1966171168
  %v207 = vunpack.c.0.s8 %v206
  %v208 = vlaneseq
  %v209 = vshrl.u32 %v208, 7
  %v210 = vsub.s32 %v207, %v209
  %v211 = vrot.slane %v195, %v210
  %v213 = vunpack.c.l.s4 1966171168
  %v214 = vunpack.c.0.s8 %v213
  %v215 = vlaneseq
  %v216 = vshrl.u32 %v215, 7
  %v217 = vsub.s32 %v214, %v216
  %v218 = vrot.slane %v196, %v217
  %v220 = vunpack.c.l.s4 1966171168
  %v221 = vunpack.c.0.s8 %v220
  %v222 = vlaneseq
  %v223 = vshrl.u32 %v222, 7
  %v224 = vsub.s32 %v221, %v223
  %v225 = vrot.slane %v197, %v224
  %v226 = vcombine.high %v204, %v204
  %v227 = vcombine.high %v211, %v211
  %v228 = vcombine.high %v218, %v218
  %v229 = vcombine.high %v225, %v225
  %v366 = vunpack.c.l.b16 %v45
  %v367 = vunpack.c.l.b16 %v46
  %v368 = vunpack.c.l.b16 %v47
  %v369 = vunpack.c.l.b16 %v48
  %v370 = vunpack.c.l.b16 %v49
  %v371 = vunpack.c.l.b16 %v50
  %v372 = vunpack.c.l.b16 %v51
  %v373 = vunpack.c.l.b16 %v52
  %v374 = vunpack.c.l.b16 %v53
  %v375 = vunpack.c.l.b16 %v54
  %v376 = vunpack.c.l.b16 %v55
  %v377 = vunpack.c.l.b16 %v56
  %v378 = vunpack.c.l.b16 %v57
  %v379 = vunpack.c.l.b16 %v58
  %v380 = vunpack.c.l.b16 %v59
  %v381 = vunpack.c.l.b16 %v60
  %v382 = vunpack.c.l.b16 %v61
  %v383 = vunpack.c.l.b16 %v62
  %v384 = vunpack.c.l.b16 %v63
  %v385 = vunpack.c.l.b16 %v64
  %v386 = vunpack.c.l.b16 %v65
  %v387 = vunpack.c.l.b16 %v66
  %v388 = vunpack.c.l.b16 %v67
  %v389 = vunpack.c.l.b16 %v68
  %v390 = vunpack.c.l.b16 %v69
  %v391 = vunpack.c.l.b16 %v70
  %v392 = vunpack.c.l.b16 %v71
  %v393 = vunpack.c.l.b16 %v72
  %v394 = vunpack.c.l.b16 %v73
  %v395 = vunpack.c.l.b16 %v74
  %v396 = vunpack.c.l.b16 %v75
  %v397 = vunpack.c.l.b16 %v76
  %v398 = vunpack.c.l.b16 %v77
  %v399 = vunpack.c.l.b16 %v78
  %v400 = vunpack.c.l.b16 %v79
  %v401 = vunpack.c.l.b16 %v80
  %v402 = vunpack.c.l.b16 %v81
  %v403 = vunpack.c.l.b16 %v82
  %v404 = vunpack.c.l.b16 %v83
  %v405 = vunpack.c.l.b16 %v84
  %v406 = vunpack.c.l.b16 %v85
  %v407 = vunpack.c.l.b16 %v86
  %v408 = vunpack.c.l.b16 %v87
  %v409 = vunpack.c.l.b16 %v88
  %v410 = vunpack.c.l.b16 %v89
  %v411 = vunpack.c.l.b16 %v90
  %v412 = vunpack.c.l.b16 %v91
  %v413 = vunpack.c.l.b16 %v92
  %v414 = vunpack.c.l.b16 %v93
  %v415 = vunpack.c.l.b16 %v94
  %v416 = vunpack.c.l.b16 %v95
  %v417 = vunpack.c.l.b16 %v96
  %v418 = vunpack.c.l.b16 %v97
  %v419 = vunpack.c.l.b16 %v98
  %v420 = vunpack.c.l.b16 %v99
  %v421 = vunpack.c.l.b16 %v100
  %v422 = vunpack.c.l.b16 %v101
  %v423 = vunpack.c.l.b16 %v102
  %v424 = vunpack.c.l.b16 %v103
  %v425 = vunpack.c.l.b16 %v104
  %v426 = vunpack.c.l.b16 %v105
  %v427 = vunpack.c.l.b16 %v106
  %v428 = vunpack.c.l.b16 %v107
  %v429 = vunpack.c.l.b16 %v108
  %v430 = vunpack.c.l.b16 %v109
  %v431 = vunpack.c.l.b16 %v110
  %v432 = vunpack.c.l.b16 %v111
  %v433 = vunpack.c.l.b16 %v112
  %v434 = vunpack.c.l.b16 %v113
  %v435 = vunpack.c.l.b16 %v114
  %v436 = vunpack.c.l.b16 %v115
  %v437 = vunpack.c.l.b16 %v116
  %v438 = vunpack.c.l.b16 %v117
  %v439 = vunpack.c.l.b16 %v118
  %v440 = vunpack.c.l.b16 %v119
  %v441 = vunpack.c.l.b16 %v120
  %v442 = vunpack.c.l.b16 %v121
  %v443 = vunpack.c.l.b16 %v122
  %v444 = vunpack.c.l.b16 %v123
  %v445 = vunpack.c.l.b16 %v124
  %v446 = vunpack.c.l.b16 %v125
  %v447 = vunpack.c.l.b16 %v126
  %v448 = vunpack.c.l.b16 %v127
  %v449 = vunpack.c.l.b16 %v128
  %v450 = vunpack.c.l.b16 %v129
  %v451 = vunpack.c.l.b16 %v130
  %v452 = vunpack.c.l.b16 %v131
  %v453 = vunpack.c.l.b16 %v132
  %v454 = vunpack.c.l.b16 %v133
  %v455 = vunpack.c.l.b16 %v134
  %v456 = vunpack.c.l.b16 %v135
  %v457 = vunpack.c.l.b16 %v136
  %v458 = vunpack.c.l.b16 %v137
  %v459 = vunpack.c.l.b16 %v138
  %v460 = vunpack.c.l.b16 %v139
  %v461 = vunpack.c.l.b16 %v140
  %v462 = vunpack.c.l.b16 %v141
  %v463 = vunpack.c.l.b16 %v142
  %v464 = vunpack.c.l.b16 %v143
  %v465 = vunpack.c.l.b16 %v144
  %v466 = vunpack.c.l.b16 %v145
  %v467 = vunpack.c.l.b16 %v146
  %v468 = vunpack.c.l.b16 %v147
  %v469 = vunpack.c.l.b16 %v148
  %v470 = vunpack.c.l.b16 %v149
  %v471 = vunpack.c.l.b16 %v150
  %v472 = vunpack.c.l.b16 %v151
  %v473 = vunpack.c.l.b16 %v152
  %v474 = vunpack.c.l.b16 %v153
  %v475 = vunpack.c.l.b16 %v154
  %v476 = vunpack.c.l.b16 %v155
  %v477 = vunpack.c.l.b16 %v156
  %v478 = vunpack.c.l.b16 %v157
  %v479 = vunpack.c.l.b16 %v158
  %v480 = vunpack.c.l.b16 %v159
  %v481 = vunpack.c.l.b16 %v160
  %v482 = vunpack.c.l.b16 %v161
  %v483 = vunpack.c.l.b16 %v162
  %v484 = vunpack.c.l.b16 %v163
  %v485 = vunpack.c.l.b16 %v164
  %v486 = vunpack.c.l.b16 %v165
  %v487 = vunpack.c.l.b16 %v166
  %v488 = vunpack.c.l.b16 %v167
  %v489 = vunpack.c.l.b16 %v168
  %v490 = vunpack.c.l.b16 %v169
  %v491 = vunpack.c.l.b16 %v170
  %v492 = vunpack.c.l.b16 %v171
  %v493 = vunpack.c.l.b16 %v172
  %v494 = vpack.c.b16 %v367, %v366
  %v495 = vpack.c.b16 %v369, %v368
  %v496 = vpack.c.b16 %v371, %v370
  %v497 = vpack.c.b16 %v373, %v372
  %v498 = vpack.c.b16 %v375, %v374
  %v499 = vpack.c.b16 %v377, %v376
  %v500 = vpack.c.b16 %v379, %v378
  %v501 = vpack.c.b16 %v381, %v380
  %v502 = vpack.c.b16 %v383, %v382
  %v503 = vpack.c.b16 %v385, %v384
  %v504 = vpack.c.b16 %v387, %v386
  %v505 = vpack.c.b16 %v389, %v388
  %v506 = vpack.c.b16 %v391, %v390
  %v507 = vpack.c.b16 %v393, %v392
  %v508 = vpack.c.b16 %v395, %v394
  %v509 = vpack.c.b16 %v397, %v396
  %v510 = vpack.c.b16 %v399, %v398
  %v511 = vpack.c.b16 %v401, %v400
  %v512 = vpack.c.b16 %v403, %v402
  %v513 = vpack.c.b16 %v405, %v404
  %v514 = vpack.c.b16 %v407, %v406
  %v515 = vpack.c.b16 %v409, %v408
  %v516 = vpack.c.b16 %v411, %v410
  %v517 = vpack.c.b16 %v413, %v412
  %v518 = vpack.c.b16 %v415, %v414
  %v519 = vpack.c.b16 %v417, %v416
  %v520 = vpack.c.b16 %v419, %v418
  %v521 = vpack.c.b16 %v421, %v420
  %v522 = vpack.c.b16 %v423, %v422
  %v523 = vpack.c.b16 %v425, %v424
  %v524 = vpack.c.b16 %v427, %v426
  %v525 = vpack.c.b16 %v429, %v428
  %v526 = vpack.c.b16 %v431, %v430
  %v527 = vpack.c.b16 %v433, %v432
  %v528 = vpack.c.b16 %v435, %v434
  %v529 = vpack.c.b16 %v437, %v436
  %v530 = vpack.c.b16 %v439, %v438
  %v531 = vpack.c.b16 %v441, %v440
  %v532 = vpack.c.b16 %v443, %v442
  %v533 = vpack.c.b16 %v445, %v444
  %v534 = vpack.c.b16 %v447, %v446
  %v535 = vpack.c.b16 %v449, %v448
  %v536 = vpack.c.b16 %v451, %v450
  %v537 = vpack.c.b16 %v453, %v452
  %v538 = vpack.c.b16 %v455, %v454
  %v539 = vpack.c.b16 %v457, %v456
  %v540 = vpack.c.b16 %v459, %v458
  %v541 = vpack.c.b16 %v461, %v460
  %v542 = vpack.c.b16 %v463, %v462
  %v543 = vpack.c.b16 %v465, %v464
  %v544 = vpack.c.b16 %v467, %v466
  %v545 = vpack.c.b16 %v469, %v468
  %v546 = vpack.c.b16 %v471, %v470
  %v547 = vpack.c.b16 %v473, %v472
  %v548 = vpack.c.b16 %v475, %v474
  %v549 = vpack.c.b16 %v477, %v476
  %v550 = vpack.c.b16 %v479, %v478
  %v551 = vpack.c.b16 %v481, %v480
  %v552 = vpack.c.b16 %v483, %v482
  %v553 = vpack.c.b16 %v485, %v484
  %v554 = vpack.c.b16 %v487, %v486
  %v555 = vpack.c.b16 %v489, %v488
  %v556 = vpack.c.b16 %v491, %v490
  %v557 = vpack.c.b16 %v493, %v492
  %622 = vmatprep.subr.bf16.mxu0 0
  %623 = vmatpush1.bf16.msra.mxu0 %v501
  %624 = vmatprep.subr.bf16.mxu0 0
  %625 = vmatpush1.bf16.msra.mxu0 %v500
  %626 = vmatprep.subr.bf16.mxu0 0
  %627 = vmatpush1.bf16.msra.mxu0 %v499
  %628 = vmatprep.subr.bf16.mxu0 0
  %629 = vmatpush1.bf16.msra.mxu0 %v498
  %630 = vmatprep.subr.bf16.mxu0 0
  %631 = vmatpush1.bf16.msra.mxu0 %v497
  %632 = vmatprep.subr.bf16.mxu0 0
  %633 = vmatpush1.bf16.msra.mxu0 %v496
  %634 = vmatprep.subr.bf16.mxu0 0
  %635 = vmatpush1.bf16.msra.mxu0 %v495
  %636 = vmatprep.subr.bf16.mxu0 0
  %637 = vmatpush1.bf16.msra.mxu0 %v494
  %638 = vmatprep.subr.bf16.mxu0 0
  %639 = vmatpush2.bf16.msra.mxu0 %v509
  %640 = vmatprep.subr.bf16.mxu0 0
  %641 = vmatpush2.bf16.msra.mxu0 %v508
  %642 = vmatprep.subr.bf16.mxu0 0
  %643 = vmatpush2.bf16.msra.mxu0 %v507
  %644 = vmatprep.subr.bf16.mxu0 0
  %645 = vmatpush2.bf16.msra.mxu0 %v506
  %646 = vmatprep.subr.bf16.mxu0 0
  %647 = vmatpush2.bf16.msra.mxu0 %v505
  %648 = vmatprep.subr.bf16.mxu0 0
  %649 = vmatpush2.bf16.msra.mxu0 %v504
  %650 = vmatprep.subr.bf16.mxu0 0
  %651 = vmatpush2.bf16.msra.mxu0 %v503
  %652 = vmatprep.subr.bf16.mxu0 0
  %653 = vmatpush2.bf16.msra.mxu0 %v502
  %654 = vmatprep.mubr.bf16.mxu0 %v218
  %655 = vmatmul.mubr.bf16.gmra.mxu0 %v204
  %v656 = vpop.f32.mrf.mxu0
  %v657 = vadd.f32 %v178, %v656
  %v658 = vpop.f32.mrf.mxu0
  %v659 = vpop.f32.mrf.mxu0
  %v660 = vpop.f32.mrf.mxu0
  %661 = vdwg.mxu0
  %662 = vmatprep.subr.bf16.mxu0 0
  %663 = vmatpush1.bf16.msra.mxu0 %v517
  %664 = vmatprep.subr.bf16.mxu0 0
  %665 = vmatpush1.bf16.msra.mxu0 %v516
  %666 = vmatprep.subr.bf16.mxu0 0
  %667 = vmatpush1.bf16.msra.mxu0 %v515
  %668 = vmatprep.subr.bf16.mxu0 0
  %669 = vmatpush1.bf16.msra.mxu0 %v514
  %670 = vmatprep.subr.bf16.mxu0 0
  %671 = vmatpush1.bf16.msra.mxu0 %v513
  %672 = vmatprep.subr.bf16.mxu0 0
  %673 = vmatpush1.bf16.msra.mxu0 %v512
  %674 = vmatprep.subr.bf16.mxu0 0
  %675 = vmatpush1.bf16.msra.mxu0 %v511
  %676 = vmatprep.subr.bf16.mxu0 0
  %677 = vmatpush1.bf16.msra.mxu0 %v510
  %678 = vmatprep.subr.bf16.mxu0 0
  %679 = vmatpush2.bf16.msra.mxu0 %v525
  %680 = vmatprep.subr.bf16.mxu0 0
  %681 = vmatpush2.bf16.msra.mxu0 %v524
  %682 = vmatprep.subr.bf16.mxu0 0
  %683 = vmatpush2.bf16.msra.mxu0 %v523
  %684 = vmatprep.subr.bf16.mxu0 0
  %685 = vmatpush2.bf16.msra.mxu0 %v522
  %686 = vmatprep.subr.bf16.mxu0 0
  %687 = vmatpush2.bf16.msra.mxu0 %v521
  %688 = vmatprep.subr.bf16.mxu0 0
  %689 = vmatpush2.bf16.msra.mxu0 %v520
  %690 = vmatprep.subr.bf16.mxu0 0
  %691 = vmatpush2.bf16.msra.mxu0 %v519
  %692 = vmatprep.subr.bf16.mxu0 0
  %693 = vmatpush2.bf16.msra.mxu0 %v518
  %694 = vmatprep.mubr.bf16.mxu0 %v228
  %695 = vmatmul.mubr.bf16.gmra.mxu0 %v226
  %v696 = vpop.f32.mrf.mxu0
  %v697 = vadd.f32 %v657, %v696
  %v698 = vpop.f32.mrf.mxu0
  %v699 = vpop.f32.mrf.mxu0
  %v700 = vpop.f32.mrf.mxu0
  %701 = vdwg.mxu0
  %702 = vmatprep.subr.bf16.mxu0 0
  %703 = vmatpush1.bf16.msra.mxu0 %v533
  %704 = vmatprep.subr.bf16.mxu0 0
  %705 = vmatpush1.bf16.msra.mxu0 %v532
  %706 = vmatprep.subr.bf16.mxu0 0
  %707 = vmatpush1.bf16.msra.mxu0 %v531
  %708 = vmatprep.subr.bf16.mxu0 0
  %709 = vmatpush1.bf16.msra.mxu0 %v530
  %710 = vmatprep.subr.bf16.mxu0 0
  %711 = vmatpush1.bf16.msra.mxu0 %v529
  %712 = vmatprep.subr.bf16.mxu0 0
  %713 = vmatpush1.bf16.msra.mxu0 %v528
  %714 = vmatprep.subr.bf16.mxu0 0
  %715 = vmatpush1.bf16.msra.mxu0 %v527
  %716 = vmatprep.subr.bf16.mxu0 0
  %717 = vmatpush1.bf16.msra.mxu0 %v526
  %718 = vmatprep.subr.bf16.mxu0 0
  %719 = vmatpush2.bf16.msra.mxu0 %v541
  %720 = vmatprep.subr.bf16.mxu0 0
  %721 = vmatpush2.bf16.msra.mxu0 %v540
  %722 = vmatprep.subr.bf16.mxu0 0
  %723 = vmatpush2.bf16.msra.mxu0 %v539
  %724 = vmatprep.subr.bf16.mxu0 0
  %725 = vmatpush2.bf16.msra.mxu0 %v538
  %726 = vmatprep.subr.bf16.mxu0 0
  %727 = vmatpush2.bf16.msra.mxu0 %v537
  %728 = vmatprep.subr.bf16.mxu0 0
  %729 = vmatpush2.bf16.msra.mxu0 %v536
  %730 = vmatprep.subr.bf16.mxu0 0
  %731 = vmatpush2.bf16.msra.mxu0 %v535
  %732 = vmatprep.subr.bf16.mxu0 0
  %733 = vmatpush2.bf16.msra.mxu0 %v534
  %734 = vmatprep.mubr.bf16.mxu0 %v225
  %735 = vmatmul.mubr.bf16.gmra.mxu0 %v211
  %v736 = vpop.f32.mrf.mxu0
  %v737 = vadd.f32 %v697, %v736
  %v738 = vpop.f32.mrf.mxu0
  %v739 = vpop.f32.mrf.mxu0
  %v740 = vpop.f32.mrf.mxu0
  %741 = vdwg.mxu0
  %742 = vmatprep.subr.bf16.mxu0 0
  %743 = vmatpush1.bf16.msra.mxu0 %v549
  %744 = vmatprep.subr.bf16.mxu0 0
  %745 = vmatpush1.bf16.msra.mxu0 %v548
  %746 = vmatprep.subr.bf16.mxu0 0
  %747 = vmatpush1.bf16.msra.mxu0 %v547
  %748 = vmatprep.subr.bf16.mxu0 0
  %749 = vmatpush1.bf16.msra.mxu0 %v546
  %750 = vmatprep.subr.bf16.mxu0 0
  %751 = vmatpush1.bf16.msra.mxu0 %v545
  %752 = vmatprep.subr.bf16.mxu0 0
  %753 = vmatpush1.bf16.msra.mxu0 %v544
  %754 = vmatprep.subr.bf16.mxu0 0
  %755 = vmatpush1.bf16.msra.mxu0 %v543
  %756 = vmatprep.subr.bf16.mxu0 0
  %757 = vmatpush1.bf16.msra.mxu0 %v542
  %758 = vmatprep.subr.bf16.mxu0 0
  %759 = vmatpush2.bf16.msra.mxu0 %v557
  %760 = vmatprep.subr.bf16.mxu0 0
  %761 = vmatpush2.bf16.msra.mxu0 %v556
  %762 = vmatprep.subr.bf16.mxu0 0
  %763 = vmatpush2.bf16.msra.mxu0 %v555
  %764 = vmatprep.subr.bf16.mxu0 0
  %765 = vmatpush2.bf16.msra.mxu0 %v554
  %766 = vmatprep.subr.bf16.mxu0 0
  %767 = vmatpush2.bf16.msra.mxu0 %v553
  %768 = vmatprep.subr.bf16.mxu0 0
  %769 = vmatpush2.bf16.msra.mxu0 %v552
  %770 = vmatprep.subr.bf16.mxu0 0
  %771 = vmatpush2.bf16.msra.mxu0 %v551
  %772 = vmatprep.subr.bf16.mxu0 0
  %773 = vmatpush2.bf16.msra.mxu0 %v550
  %774 = vmatprep.mubr.bf16.mxu0 %v229
  %775 = vmatmul.mubr.bf16.gmra.mxu0 %v227
  %v776 = vpop.f32.mrf.mxu0
  %v777 = vadd.f32 %v737, %v776
  %v778 = vpop.f32.mrf.mxu0
  %v779 = vpop.f32.mrf.mxu0
  %v780 = vpop.f32.mrf.mxu0
  %781 = vdwg.mxu0
  %vm782 = vcmp.gt.f32.partialorder %v777, 0.0
  %v783 = vmul.f32 %v777, 0.2
  %v784 = vsel %vm782, %v777, %v783
  %v785 = vld [vmem:[%s1] sm:$0x3]
  %vm786 = vcmp.ge.u32.totalorder %v785, 1288490189
  %v787 = vmul.f32 %v784, 1.4285715
  %v788 = vsel %vm786, %v787, 0.0
  %v789 = vld [vmem:[%s6] sm:$0xff]
  %v790 = vld [vmem:[%s6 + $0x8] sm:$0xff]
  %v791 = vld [vmem:[%s6 + $0x10] sm:$0xff]
  %v792 = vld [vmem:[%s6 + $0x18] sm:$0xff]
  %v793 = vld [vmem:[%s7] sm:$0x1]
  %v795 = vlaneseq
  %v796 = vshrl.u32 %v795, 7
  %v797 = vsub.s32 0, %v796
  %v798 = vrot.slane %v793, %v797
  %vm800 = vcmask 261120
  %v802 = vsel %vm800, %v788, 0
  %804 = vmatprep.subr.mxu0 0.0
  %805 = vmatpush1.msra.mxu0 0.0
  %806 = vmatprep.subr.mxu0 0.0
  %807 = vmatpush1.msra.mxu0 0.0
  %808 = vmatprep.subr.mxu0 0.0
  %809 = vmatpush1.msra.mxu0 0.0
  %810 = vmatprep.subr.mxu0 0.0
  %811 = vmatpush1.msra.mxu0 0.0
  %812 = vmatprep.subr.mxu0 0.0
  %813 = vmatpush1.msra.mxu0 0.0
  %814 = vmatprep.subr.mxu0 0.0
  %815 = vmatpush1.msra.mxu0 0.0
  %816 = vmatprep.subr.mxu0 0.0
  %817 = vmatpush1.msra.mxu0 0.0
  %818 = vmatprep.subr.mxu0 0.0
  %819 = vmatpush1.msra.mxu0 0.0
  %820 = vmatprep.subr.mxu0 0.0
  %821 = vmatpush1.msra.mxu0 0.0
  %822 = vmatprep.subr.mxu0 0.0
  %823 = vmatpush1.msra.mxu0 0.0
  %824 = vmatprep.subr.mxu0 0.0
  %825 = vmatpush1.msra.mxu0 0.0
  %826 = vmatprep.subr.mxu0 0.0
  %827 = vmatpush1.msra.mxu0 0.0
  %828 = vmatprep.subr.mxu0 0.0
  %829 = vmatpush1.msra.mxu0 %v792
  %830 = vmatprep.subr.mxu0 0.0
  %831 = vmatpush1.msra.mxu0 %v791
  %832 = vmatprep.subr.mxu0 0.0
  %833 = vmatpush1.msra.mxu0 %v790
  %834 = vmatprep.subr.mxu0 0.0
  %835 = vmatpush1.msra.mxu0 %v789
  %836 = vmatprep.subr.mxu0 0.0
  %837 = vmatpush2.msra.mxu0 0.0
  %838 = vmatprep.subr.mxu0 0.0
  %839 = vmatpush2.msra.mxu0 0.0
  %840 = vmatprep.subr.mxu0 0.0
  %841 = vmatpush2.msra.mxu0 0.0
  %842 = vmatprep.subr.mxu0 0.0
  %843 = vmatpush2.msra.mxu0 0.0
  %844 = vmatprep.subr.mxu0 0.0
  %845 = vmatpush2.msra.mxu0 0.0
  %846 = vmatprep.subr.mxu0 0.0
  %847 = vmatpush2.msra.mxu0 0.0
  %848 = vmatprep.subr.mxu0 0.0
  %849 = vmatpush2.msra.mxu0 0.0
  %850 = vmatprep.subr.mxu0 0.0
  %851 = vmatpush2.msra.mxu0 0.0
  %852 = vmatprep.subr.mxu0 0.0
  %853 = vmatpush2.msra.mxu0 0.0
  %854 = vmatprep.subr.mxu0 0.0
  %855 = vmatpush2.msra.mxu0 0.0
  %856 = vmatprep.subr.mxu0 0.0
  %857 = vmatpush2.msra.mxu0 0.0
  %858 = vmatprep.subr.mxu0 0.0
  %859 = vmatpush2.msra.mxu0 0.0
  %860 = vmatprep.subr.mxu0 0.0
  %861 = vmatpush2.msra.mxu0 0.0
  %862 = vmatprep.subr.mxu0 0.0
  %863 = vmatpush2.msra.mxu0 0.0
  %864 = vmatprep.subr.mxu0 0.0
  %865 = vmatpush2.msra.mxu0 0.0
  %866 = vmatprep.subr.mxu0 0.0
  %867 = vmatpush2.msra.mxu0 0.0
  %868 = vmatprep.mubr.f32.mxu0 0.0
  %869 = vmatmul.mubr.f32.gmra.mxu0 %v802
  %v870 = vpop.f32.mrf.mxu0
  %v871 = vadd.f32 %v798, %v870
  %v872 = vpop.f32.mrf.mxu0
  %873 = vdwg.mxu0
  %vm874 = vcmp.gt.f32.partialorder %v871, 0.0
  %v875 = vmul.f32 %v871, 0.2
  %v876 = vsel %vm874, %v871, %v875
  %v877 = vld [vmem:[%s2] sm:$0x3]
  %vm878 = vcmp.ge.u32.totalorder %v877, 1288490189
  %v879 = vmul.f32 %v876, 1.4285715
  %v880 = vsel %vm878, %v879, 0.0
  %v881 = vld [vmem:[%s8] sm:$0xff]
  %v882 = vld [vmem:[%s8 + $0x8] sm:$0xff]
  %v883 = vld [vmem:[%s9] sm:$0x1]
  %v885 = vlaneseq
  %v886 = vshrl.u32 %v885, 7
  %v887 = vsub.s32 0, %v886
  %v888 = vrot.slane %v883, %v887
  %vm890 = vcmask 130048
  %v892 = vsel %vm890, %v880, 0
  %894 = vmatprep.subr.mxu0 0.0
  %895 = vmatpush1.msra.mxu0 0.0
  %896 = vmatprep.subr.mxu0 0.0
  %897 = vmatpush1.msra.mxu0 0.0
  %898 = vmatprep.subr.mxu0 0.0
  %899 = vmatpush1.msra.mxu0 0.0
  %900 = vmatprep.subr.mxu0 0.0
  %901 = vmatpush1.msra.mxu0 0.0
  %902 = vmatprep.subr.mxu0 0.0
  %903 = vmatpush1.msra.mxu0 0.0
  %904 = vmatprep.subr.mxu0 0.0
  %905 = vmatpush1.msra.mxu0 0.0
  %906 = vmatprep.subr.mxu0 0.0
  %907 = vmatpush1.msra.mxu0 0.0
  %908 = vmatprep.subr.mxu0 0.0
  %909 = vmatpush1.msra.mxu0 0.0
  %910 = vmatprep.subr.mxu0 0.0
  %911 = vmatpush1.msra.mxu0 0.0
  %912 = vmatprep.subr.mxu0 0.0
  %913 = vmatpush1.msra.mxu0 0.0
  %914 = vmatprep.subr.mxu0 0.0
  %915 = vmatpush1.msra.mxu0 0.0
  %916 = vmatprep.subr.mxu0 0.0
  %917 = vmatpush1.msra.mxu0 0.0
  %918 = vmatprep.subr.mxu0 0.0
  %919 = vmatpush1.msra.mxu0 0.0
  %920 = vmatprep.subr.mxu0 0.0
  %921 = vmatpush1.msra.mxu0 0.0
  %922 = vmatprep.subr.mxu0 0.0
  %923 = vmatpush1.msra.mxu0 %v882
  %924 = vmatprep.subr.mxu0 0.0
  %925 = vmatpush1.msra.mxu0 %v881
  %926 = vmatprep.subr.mxu0 0.0
  %927 = vmatpush2.msra.mxu0 0.0
  %928 = vmatprep.subr.mxu0 0.0
  %929 = vmatpush2.msra.mxu0 0.0
  %930 = vmatprep.subr.mxu0 0.0
  %931 = vmatpush2.msra.mxu0 0.0
  %932 = vmatprep.subr.mxu0 0.0
  %933 = vmatpush2.msra.mxu0 0.0
  %934 = vmatprep.subr.mxu0 0.0
  %935 = vmatpush2.msra.mxu0 0.0
  %936 = vmatprep.subr.mxu0 0.0
  %937 = vmatpush2.msra.mxu0 0.0
  %938 = vmatprep.subr.mxu0 0.0
  %939 = vmatpush2.msra.mxu0 0.0
  %940 = vmatprep.subr.mxu0 0.0
  %941 = vmatpush2.msra.mxu0 0.0
  %942 = vmatprep.subr.mxu0 0.0
  %943 = vmatpush2.msra.mxu0 0.0
  %944 = vmatprep.subr.mxu0 0.0
  %945 = vmatpush2.msra.mxu0 0.0
  %946 = vmatprep.subr.mxu0 0.0
  %947 = vmatpush2.msra.mxu0 0.0
  %948 = vmatprep.subr.mxu0 0.0
  %949 = vmatpush2.msra.mxu0 0.0
  %950 = vmatprep.subr.mxu0 0.0
  %951 = vmatpush2.msra.mxu0 0.0
  %952 = vmatprep.subr.mxu0 0.0
  %953 = vmatpush2.msra.mxu0 0.0
  %954 = vmatprep.subr.mxu0 0.0
  %955 = vmatpush2.msra.mxu0 0.0
  %956 = vmatprep.subr.mxu0 0.0
  %957 = vmatpush2.msra.mxu0 0.0
  %958 = vmatprep.mubr.f32.mxu0 0.0
  %959 = vmatmul.mubr.f32.gmra.mxu0 %v892
  %v960 = vpop.f32.mrf.mxu0
  %v961 = vadd.f32 %v888, %v960
  %v962 = vpop.f32.mrf.mxu0
  %963 = vdwg.mxu0
  %vm964 = vcmp.gt.f32.partialorder %v961, 0.0
  %v965 = vmul.f32 %v961, 0.2
  %v966 = vsel %vm964, %v961, %v965
  %v967 = vld [vmem:[%s3] sm:$0x3]
  %vm968 = vcmp.ge.u32.totalorder %v967, 1288490189
  %v969 = vmul.f32 %v966, 1.4285715
  %v970 = vsel %vm968, %v969, 0.0
  %v971 = vld [vmem:[%s10] sm:$0xff]
  %v972 = vld [vmem:[#allocation2] sm:$0x1]
  %v974 = vlaneseq
  %v975 = vshrl.u32 %v974, 7
  %v976 = vsub.s32 0, %v975
  %v977 = vrot.slane %v972, %v976
  %vm979 = vcmask 64512
  %v981 = vsel %vm979, %v970, 0
  %983 = vmatprep.subr.mxu0 0.0
  %984 = vmatpush1.msra.mxu0 0.0
  %985 = vmatprep.subr.mxu0 0.0
  %986 = vmatpush1.msra.mxu0 0.0
  %987 = vmatprep.subr.mxu0 0.0
  %988 = vmatpush1.msra.mxu0 0.0
  %989 = vmatprep.subr.mxu0 0.0
  %990 = vmatpush1.msra.mxu0 0.0
  %991 = vmatprep.subr.mxu0 0.0
  %992 = vmatpush1.msra.mxu0 0.0
  %993 = vmatprep.subr.mxu0 0.0
  %994 = vmatpush1.msra.mxu0 0.0
  %995 = vmatprep.subr.mxu0 0.0
  %996 = vmatpush1.msra.mxu0 0.0
  %997 = vmatprep.subr.mxu0 0.0
  %998 = vmatpush1.msra.mxu0 0.0
  %999 = vmatprep.subr.mxu0 0.0
  %1000 = vmatpush1.msra.mxu0 0.0
  %1001 = vmatprep.subr.mxu0 0.0
  %1002 = vmatpush1.msra.mxu0 0.0
  %1003 = vmatprep.subr.mxu0 0.0
  %1004 = vmatpush1.msra.mxu0 0.0
  %1005 = vmatprep.subr.mxu0 0.0
  %1006 = vmatpush1.msra.mxu0 0.0
  %1007 = vmatprep.subr.mxu0 0.0
  %1008 = vmatpush1.msra.mxu0 0.0
  %1009 = vmatprep.subr.mxu0 0.0
  %1010 = vmatpush1.msra.mxu0 0.0
  %1011 = vmatprep.subr.mxu0 0.0
  %1012 = vmatpush1.msra.mxu0 0.0
  %1013 = vmatprep.subr.mxu0 0.0
  %1014 = vmatpush1.msra.mxu0 %v971
  %1015 = vmatprep.subr.mxu0 0.0
  %1016 = vmatpush2.msra.mxu0 0.0
  %1017 = vmatprep.subr.mxu0 0.0
  %1018 = vmatpush2.msra.mxu0 0.0
  %1019 = vmatprep.subr.mxu0 0.0
  %1020 = vmatpush2.msra.mxu0 0.0
  %1021 = vmatprep.subr.mxu0 0.0
  %1022 = vmatpush2.msra.mxu0 0.0
  %1023 = vmatprep.subr.mxu0 0.0
  %1024 = vmatpush2.msra.mxu0 0.0
  %1025 = vmatprep.subr.mxu0 0.0
  %1026 = vmatpush2.msra.mxu0 0.0
  %1027 = vmatprep.subr.mxu0 0.0
  %1028 = vmatpush2.msra.mxu0 0.0
  %1029 = vmatprep.subr.mxu0 0.0
  %1030 = vmatpush2.msra.mxu0 0.0
  %1031 = vmatprep.subr.mxu0 0.0
  %1032 = vmatpush2.msra.mxu0 0.0
  %1033 = vmatprep.subr.mxu0 0.0
  %1034 = vmatpush2.msra.mxu0 0.0
  %1035 = vmatprep.subr.mxu0 0.0
  %1036 = vmatpush2.msra.mxu0 0.0
  %1037 = vmatprep.subr.mxu0 0.0
  %1038 = vmatpush2.msra.mxu0 0.0
  %1039 = vmatprep.subr.mxu0 0.0
  %1040 = vmatpush2.msra.mxu0 0.0
  %1041 = vmatprep.subr.mxu0 0.0
  %1042 = vmatpush2.msra.mxu0 0.0
  %1043 = vmatprep.subr.mxu0 0.0
  %1044 = vmatpush2.msra.mxu0 0.0
  %1045 = vmatprep.subr.mxu0 0.0
  %1046 = vmatpush2.msra.mxu0 0.0
  %1047 = vmatprep.mubr.f32.mxu0 0.0
  %1048 = vmatmul.mubr.f32.gmra.mxu0 %v981
  %v1049 = vpop.f32.mrf.mxu0
  %v1050 = vadd.f32 %v977, %v1049
  %v1051 = vpop.f32.mrf.mxu0
  %1052 = vdwg.mxu0
  %v1053 = vxor.u32 %v1050, 2147483648
  %v1054 = vmul.f32 %v1053, 1.442695
  %v1055 = vpow.pop %v1054
  %v1056 = vadd.f32 %v1055, 1.0
  %v1057 = vrcp.pop %v1056
  %v1058 = vmul.f32 1.0, %v1057
  %vm1059 = vcmask 1024
  %1060 = vst.msk [vmem:[%s12] sm:$0x3] %vm1059, %v1058
  // Predicated region
  $region50: #{tpu_custom_call.1} parent=0 // pred_check
    _
  $region51: #{tpu_custom_call.1} parent=0 // pred_check_branch
    %1062 = sbr.rel (0) target = $region53
  $region52: #{tpu_custom_call.1} parent=0 // pred_region
    _
  $region53: #{tpu_custom_call.1} parent=0 // pred_fallthru
    _
  // Predicated region
  $region54: #{tpu_custom_call.1} parent=0 // pred_check
    _
  $region55: #{tpu_custom_call.1} parent=0 // pred_check_branch
    %1064 = sbr.rel (0) target = $region57
  $region56: #{tpu_custom_call.1} parent=0 // pred_region
    _
  $region57: #{tpu_custom_call.1} parent=0 // pred_fallthru
    _

</llo_original>
